<compile_context>
chip_gen: v6e
topology: v6e:2x2x1
jax: 0.10.0
libtpu: 0.0.40
codegen_flags: <defaults>
</compile_context>

<pallas_src>
from math import sqrt

import jax
import jax.numpy as jnp
from jax.experimental import pallas as pl
from jax.experimental.pallas import tpu as pltpu


# --------------------------------------------------------------------------
# Kernel: one (batch, head-group) block per grid step.
# --------------------------------------------------------------------------
def _sdpa_kernel(q_ref, k_ref, v_ref, mat_ref, msk_ref, o_ref):
    q = q_ref[0]                                   # (TG, Lq, Dk)   bf16
    k = k_ref[0]                                   # (TG, Lk, Dk)   bf16
    v = v_ref[0]                                   # (TG, Lk, Dv)   bf16
    mat = mat_ref[0].astype(jnp.float32)           # (1|TG, Lq, Lk) bias*1/sqrt(dk)
    msk = msk_ref[0]                               # (1|TG, Lq, Lk) int8, !=0 => masked

    # Q @ K^T on the MXU, batched over the head group, f32 accumulation.
    s = jnp.einsum('gqd,gkd->gqk', q, k,
                   preferred_element_type=jnp.float32)          # (TG, Lq, Lk)
    s = s * mat                                                  # bias already scaled
    s = jnp.where(msk != 0, jnp.float32(-1e9), s)                # masked_fill_

    # Numerically-stable softmax statistics in f32 (normalization deferred).
    m = jnp.max(s, axis=-1, keepdims=True)
    p = jnp.exp(s - m)
    denom = jnp.sum(p, axis=-1, keepdims=True)                   # (TG, Lq, 1)

    # Unnormalized attn @ V on the MXU, then one small normalization multiply
    # over (TG, Lq, Dv) using the EUP reciprocal (free bundle slot).
    ctx = jnp.einsum('gqk,gkd->gqd', p.astype(v.dtype), v,
                     preferred_element_type=jnp.float32)         # (TG, Lq, Dv)
    o_ref[0] = (ctx * pl.reciprocal(denom, approx=True)).astype(o_ref.dtype)


# --------------------------------------------------------------------------
# Head-group (TG) selection.
# --------------------------------------------------------------------------
def _pick_head_group(B, H, Lq, Lk, Dk, Dv, mat_per_head, msk_per_head,
                     vmem_budget_bytes=20 * 1024 * 1024):
    """Largest divisor TG of H such that
       * the grid still has >= 2 steps (keeps both v7x TensorCores fed) unless
         the whole problem is a single (batch, head) pair, and
       * the double-buffered per-step working set fits a conservative VMEM
         budget (well under the 32 MiB scoped limit we request, and under
         v7x's 64 MiB physical VMEM).
    On single-TensorCore chips (v5e/v6e) the >=2-step rule costs at most one
    extra ~0.35 us grid step, so one generation-agnostic rule is kept."""
    best = 1
    for tg in range(1, H + 1):
        if H % tg:
            continue
        steps = B * (H // tg)
        if steps < 2 and B * H >= 2:
            continue
        qkv = tg * (Lq * Dk + Lk * Dk + Lk * Dv) * 2           # bf16 Q,K,V blocks
        mat = (tg if mat_per_head else 1) * Lq * Lk * 2        # bf16 bias block
        msk = (tg if msk_per_head else 1) * Lq * Lk * 1        # int8 mask block
        out = tg * Lq * Dv * 4                                 # f32 output block
        work = 2 * tg * Lq * Lk * 4                            # f32 scores + probs
        if 2 * (qkv + mat + msk + out) + work > vmem_budget_bytes:
            continue
        best = tg
    return best


# --------------------------------------------------------------------------
# Wrapper
# --------------------------------------------------------------------------
def _prep_bias(x, B, H, Lq, Lk, dtype):
    """Normalize bias / mask to (B, 1|H, Lq, Lk) and report head dependence.
    Head-invariant inputs keep a singleton head axis so the kernel only DMAs
    them once per batch (index_map ignores the head-group grid index)."""
    x = jnp.asarray(x)
    if x.ndim == 2:            # (Lq, Lk)
        x = x[None, None]
    elif x.ndim == 3:          # (B, Lq, Lk)
        x = x[:, None]
    elif x.ndim != 4:
        raise ValueError(f"bias/mask must be 2/3/4-D, got shape {x.shape}")
    per_head = (x.shape[1] == H) and H > 1
    Ht = H if per_head else 1
    x = jnp.broadcast_to(x, (B, Ht, Lq, Lk)).astype(dtype)
    return x, per_head


def scaled_dot_product_attention(Q, K, V, attn_mask, matrix, *, d_k=None):
    """Q,K: (B,H,Lq/Lk,Dk); V: (B,H,Lk,Dv); attn_mask/matrix broadcastable to
    (B,H,Lq,Lk) (head-invariant versions are handled without H-fold DMA)."""
    B, H, Lq, Dk = Q.shape
    Lk = K.shape[2]
    Dv = V.shape[3]
    if d_k is None:
        d_k = Dk

    # Fold 1/sqrt(d_k) into the multiplicative bias (fuses into the bf16 cast),
    # removing the per-step full-size scale multiply from the kernel.
    mat_scaled, mat_per_head = _prep_bias(
        jnp.asarray(matrix, jnp.float32) * (1.0 / sqrt(d_k)),
        B, H, Lq, Lk, jnp.bfloat16)
    msk, msk_per_head = _prep_bias(attn_mask, B, H, Lq, Lk, jnp.int8)

    TG = _pick_head_group(B, H, Lq, Lk, Dk, Dv, mat_per_head, msk_per_head)
    nG = H // TG

    # bf16 MXU operands / halved DMA; softmax math stays f32 in-kernel.
    q = Q.astype(jnp.bfloat16)
    k = K.astype(jnp.bfloat16)
    v = V.astype(jnp.bfloat16)

    def qkv_map(b, g):
        return (b, g, 0, 0)

    def batch_only_map(b, g):
        return (b, 0, 0, 0)

    mat_map = qkv_map if mat_per_head else batch_only_map
    msk_map = qkv_map if msk_per_head else batch_only_map

    out = pl.pallas_call(
        _sdpa_kernel,
        out_shape=jax.ShapeDtypeStruct((B, H, Lq, Dv), Q.dtype),
        grid=(B, nG),
        in_specs=[
            pl.BlockSpec((1, TG, Lq, Dk), qkv_map),
            pl.BlockSpec((1, TG, Lk, Dk), qkv_map),
            pl.BlockSpec((1, TG, Lk, Dv), qkv_map),
            pl.BlockSpec((1, TG if mat_per_head else 1, Lq, Lk), mat_map),
            pl.BlockSpec((1, TG if msk_per_head else 1, Lq, Lk), msk_map),
        ],
        out_specs=pl.BlockSpec((1, TG, Lq, Dv), qkv_map),
        compiler_params=pltpu.CompilerParams(
            dimension_semantics=("parallel", "parallel"),
            vmem_limit_bytes=32 * 1024 * 1024),
    )(q, k, v, mat_scaled, msk)
    return out


# --------------------------------------------------------------------------
# Demo / self-check
# --------------------------------------------------------------------------
if __name__ == "__main__":
    key = jax.random.PRNGKey(0)
    B, H, L, Dk, Dv = 2, 4, 16, 32, 32

    k1, k2, k3, k4 = jax.random.split(key, 4)
    Q = jax.random.normal(k1, (B, H, L, Dk), jnp.float32)
    K = jax.random.normal(k2, (B, H, L, Dk), jnp.float32)
    V = jax.random.normal(k3, (B, H, L, Dv), jnp.float32)

    # Key-padding mask (True = masked), head-invariant -> passed as (B, Lq, Lk).
    lengths = jnp.array([14, 11], jnp.int32)
    key_is_pad = jnp.arange(L)[None, :] >= lengths[:, None]             # (B, Lk)
    attn_mask = jnp.broadcast_to(key_is_pad[:, None, :], (B, L, L))     # (B, Lq, Lk)

    # TransFoxMol-style multiplicative bias (same copy across heads).
    matrix = jax.random.uniform(k4, (B, 1, L, L), jnp.float32,
                                minval=0.0, maxval=1.2)

    out = scaled_dot_product_attention(Q, K, V, attn_mask, matrix, d_k=Dk)
    out = jax.block_until_ready(out)

    # Pure-JAX f32 reference (dropout = identity, eval mode).
    s = jnp.einsum('bhqd,bhkd->bhqk', Q, K) / sqrt(Dk)
    s = s * matrix
    s = jnp.where(attn_mask[:, None, :, :], -1e9, s)
    ref = jnp.einsum('bhqk,bhkd->bhqd', jax.nn.softmax(s, axis=-1), V)

    assert out.shape == (B, H, L, Dv), out.shape
    assert bool(jnp.all(jnp.isfinite(out)))
    # Tolerance covers bf16 MXU operands, bf16 bias, and approx EUP reciprocal.
    max_err = float(jnp.max(jnp.abs(out - ref)))
    assert max_err < 1e-1, f"max abs err vs f32 reference: {max_err}"
    print("KERNEL_OK")
</pallas_src>

<mosaic_0001>
module attributes {stable_mosaic.version = 11 : i64} {
  func.func @_sdpa_kernel(%arg0: i32, %arg1: i32, %arg2: memref<1x4x16x32xbf16, #tpu.memory_space<vmem>>, %arg3: memref<1x4x16x32xbf16, #tpu.memory_space<vmem>>, %arg4: memref<1x4x16x32xbf16, #tpu.memory_space<vmem>>, %arg5: memref<1x1x16x16xbf16, #tpu.memory_space<vmem>>, %arg6: memref<1x1x16x16xi8, #tpu.memory_space<vmem>>, %arg7: memref<1x4x16x32xf32, #tpu.memory_space<vmem>>) attributes {dimension_semantics = [#tpu.dimension_semantics<parallel>, #tpu.dimension_semantics<parallel>], iteration_bounds = array<i64: 2, 1>, scalar_prefetch = 0 : i64, scratch_operands = 0 : i64, tpu.core_type = #tpu.core_type<tc>, window_params = [{transform_indices = @transform_0, window_bounds = array<i64: 1, 4, 16, 32>}, {transform_indices = @transform_1, window_bounds = array<i64: 1, 4, 16, 32>}, {transform_indices = @transform_2, window_bounds = array<i64: 1, 4, 16, 32>}, {transform_indices = @transform_3, window_bounds = array<i64: 1, 1, 16, 16>}, {transform_indices = @transform_4, window_bounds = array<i64: 1, 1, 16, 16>}, {transform_indices = @transform_5, window_bounds = array<i64: 1, 4, 16, 32>}]} {
    %c0 = arith.constant 0 : index
    %c0_0 = arith.constant 0 : index
    %c0_1 = arith.constant 0 : index
    %c0_2 = arith.constant 0 : index
    %0 = vector.load %arg2[%c0, %c0_0, %c0_1, %c0_2] : memref<1x4x16x32xbf16, #tpu.memory_space<vmem>>, vector<1x4x16x32xbf16>
    %1 = vector.shape_cast %0 : vector<1x4x16x32xbf16> to vector<4x16x32xbf16>
    %c0_3 = arith.constant 0 : index
    %c0_4 = arith.constant 0 : index
    %c0_5 = arith.constant 0 : index
    %c0_6 = arith.constant 0 : index
    %2 = vector.load %arg3[%c0_3, %c0_4, %c0_5, %c0_6] : memref<1x4x16x32xbf16, #tpu.memory_space<vmem>>, vector<1x4x16x32xbf16>
    %3 = vector.shape_cast %2 : vector<1x4x16x32xbf16> to vector<4x16x32xbf16>
    %c0_7 = arith.constant 0 : index
    %c0_8 = arith.constant 0 : index
    %c0_9 = arith.constant 0 : index
    %c0_10 = arith.constant 0 : index
    %4 = vector.load %arg4[%c0_7, %c0_8, %c0_9, %c0_10] : memref<1x4x16x32xbf16, #tpu.memory_space<vmem>>, vector<1x4x16x32xbf16>
    %5 = vector.shape_cast %4 : vector<1x4x16x32xbf16> to vector<4x16x32xbf16>
    %c0_11 = arith.constant 0 : index
    %c0_12 = arith.constant 0 : index
    %c0_13 = arith.constant 0 : index
    %c0_14 = arith.constant 0 : index
    %6 = vector.load %arg5[%c0_11, %c0_12, %c0_13, %c0_14] : memref<1x1x16x16xbf16, #tpu.memory_space<vmem>>, vector<1x1x16x16xbf16>
    %7 = vector.shape_cast %6 : vector<1x1x16x16xbf16> to vector<1x16x16xbf16>
    %8 = arith.extf %7 : vector<1x16x16xbf16> to vector<1x16x16xf32>
    %c0_15 = arith.constant 0 : index
    %c0_16 = arith.constant 0 : index
    %c0_17 = arith.constant 0 : index
    %c0_18 = arith.constant 0 : index
    %9 = vector.load %arg6[%c0_15, %c0_16, %c0_17, %c0_18] : memref<1x1x16x16xi8, #tpu.memory_space<vmem>>, vector<1x1x16x16xi8>
    %10 = vector.shape_cast %9 : vector<1x1x16x16xi8> to vector<1x16x16xi8>
    "tpu.trace_start"() <{level = 10 : i32, message = "gqd,gkd->gqk"}> : () -> ()
    %cst = arith.constant dense<0.000000e+00> : vector<4x16x16xf32>
    %11 = tpu.matmul %1, %3, %cst {dimension_numbers = #tpu.dot_dimension_numbers<[2], [2], [1], [1], [0, 0, 0, 1, 1, 1], [0], [0]>} : vector<4x16x32xbf16>, vector<4x16x32xbf16>, vector<4x16x16xf32> -> vector<4x16x16xf32>
    "tpu.trace_stop"() : () -> ()
    %12 = vector.broadcast %8 : vector<1x16x16xf32> to vector<4x16x16xf32>
    %13 = arith.mulf %11, %12 : vector<4x16x16xf32>
    %c0_i8 = arith.constant 0 : i8
    %14 = vector.broadcast %c0_i8 : i8 to vector<1x16x16xi8>
    %15 = arith.cmpi ne, %10, %14 : vector<1x16x16xi8>
    %cst_19 = arith.constant -1.000000e+09 : f32
    %16 = vector.shape_cast %15 : vector<1x16x16xi1> to vector<1x16x16xi1>
    %17 = vector.broadcast %16 : vector<1x16x16xi1> to vector<4x16x16xi1>
    %18 = vector.broadcast %cst_19 : f32 to vector<4x16x16xf32>
    %19 = arith.select %17, %18, %13 : vector<4x16x16xi1>, vector<4x16x16xf32>
    %cst_20 = arith.constant dense<0xFF800000> : vector<4x16xf32>
    %20 = vector.multi_reduction <maximumf>, %19, %cst_20 [2] : vector<4x16x16xf32> to vector<4x16xf32>
    %21 = vector.shape_cast %20 : vector<4x16xf32> to vector<4x16x1xf32>
    %22 = vector.broadcast %21 : vector<4x16x1xf32> to vector<4x16x16xf32>
    %23 = arith.subf %19, %22 : vector<4x16x16xf32>
    %24 = math.exp %23 : vector<4x16x16xf32>
    %cst_21 = arith.constant dense<0.000000e+00> : vector<4x16xf32>
    %25 = vector.multi_reduction <add>, %24, %cst_21 [2] : vector<4x16x16xf32> to vector<4x16xf32>
    %26 = vector.shape_cast %25 : vector<4x16xf32> to vector<4x16x1xf32>
    %27 = arith.truncf %24 : vector<4x16x16xf32> to vector<4x16x16xbf16>
    "tpu.trace_start"() <{level = 10 : i32, message = "gqk,gkd->gqd"}> : () -> ()
    %cst_22 = arith.constant dense<0.000000e+00> : vector<4x16x32xf32>
    %28 = tpu.matmul %27, %5, %cst_22 {dimension_numbers = #tpu.dot_dimension_numbers<[2], [1], [1], [2], [0, 0, 0, 1, 1, 2], [0], [0]>} : vector<4x16x16xbf16>, vector<4x16x32xbf16>, vector<4x16x32xf32> -> vector<4x16x32xf32>
    "tpu.trace_stop"() : () -> ()
    %29 = tpu.reciprocal %26 {approx = true} : vector<4x16x1xf32> -> vector<4x16x1xf32>
    %30 = vector.broadcast %29 : vector<4x16x1xf32> to vector<4x16x32xf32>
    %31 = arith.mulf %28, %30 : vector<4x16x32xf32>
    %c0_23 = arith.constant 0 : index
    %c0_24 = arith.constant 0 : index
    %c0_25 = arith.constant 0 : index
    %c0_26 = arith.constant 0 : index
    %32 = vector.load %arg7[%c0_23, %c0_24, %c0_25, %c0_26] : memref<1x4x16x32xf32, #tpu.memory_space<vmem>>, vector<1x4x16x32xf32>
    %33 = vector.shape_cast %32 : vector<1x4x16x32xf32> to vector<4x16x32xf32>
    %34 = vector.shape_cast %31 : vector<4x16x32xf32> to vector<1x4x16x32xf32>
    tpu.vector_store %arg7[%c0_23, %c0_24, %c0_25, %c0_26], %34 {strides = array<i32>} : memref<1x4x16x32xf32, #tpu.memory_space<vmem>>, vector<1x4x16x32xf32>,
    return
  }
  func.func @transform_0(%arg0: i32, %arg1: i32) -> (i32, i32, i32, i32) {
    %c0_i32 = arith.constant 0 : i32
    %c0_i32_0 = arith.constant 0 : i32
    %c0_i32_1 = arith.constant 0 : i32
    return %arg0, %arg1, %c0_i32, %c0_i32_0 : i32, i32, i32, i32
  }
  func.func @transform_1(%arg0: i32, %arg1: i32) -> (i32, i32, i32, i32) {
    %c0_i32 = arith.constant 0 : i32
    %c0_i32_0 = arith.constant 0 : i32
    %c0_i32_1 = arith.constant 0 : i32
    return %arg0, %arg1, %c0_i32, %c0_i32_0 : i32, i32, i32, i32
  }
  func.func @transform_2(%arg0: i32, %arg1: i32) -> (i32, i32, i32, i32) {
    %c0_i32 = arith.constant 0 : i32
    %c0_i32_0 = arith.constant 0 : i32
    %c0_i32_1 = arith.constant 0 : i32
    return %arg0, %arg1, %c0_i32, %c0_i32_0 : i32, i32, i32, i32
  }
  func.func @transform_3(%arg0: i32, %arg1: i32) -> (i32, i32, i32, i32) {
    %c0_i32 = arith.constant 0 : i32
    %c0_i32_0 = arith.constant 0 : i32
    %c0_i32_1 = arith.constant 0 : i32
    %c0_i32_2 = arith.constant 0 : i32
    return %arg0, %c0_i32, %c0_i32_0, %c0_i32_1 : i32, i32, i32, i32
  }
  func.func @transform_4(%arg0: i32, %arg1: i32) -> (i32, i32, i32, i32) {
    %c0_i32 = arith.constant 0 : i32
    %c0_i32_0 = arith.constant 0 : i32
    %c0_i32_1 = arith.constant 0 : i32
    %c0_i32_2 = arith.constant 0 : i32
    return %arg0, %c0_i32, %c0_i32_0, %c0_i32_1 : i32, i32, i32, i32
  }
  func.func @transform_5(%arg0: i32, %arg1: i32) -> (i32, i32, i32, i32) {
    %c0_i32 = arith.constant 0 : i32
    %c0_i32_0 = arith.constant 0 : i32
    %c0_i32_1 = arith.constant 0 : i32
    return %arg0, %arg1, %c0_i32, %c0_i32_0 : i32, i32, i32, i32
  }
}

</mosaic_0001>

<llo_original>
// kernel: tpu_custom_call.1
$region0: #{tpu_custom_call.1}
  #allocation0 [shape = 'u32[]', space=smem, size = 0x4, offset = 0x4, fixed_abs, tag = 'smem constant byte address 0x4 - core index']
  #allocation1 [shape = 'u32[144,128]{1,0:T(1,128)}', space=vmem, size = 0x12000, scoped, tag = 'internal scratch']
  %s0 = inlined_call_operand.hbm [shape: bf16[2,4,16,32], index: 0, kind: input, shape index: {}]
  %s1 = inlined_call_operand.hbm [shape: bf16[2,4,16,32], index: 1, kind: input, shape index: {}]
  %s2 = inlined_call_operand.hbm [shape: bf16[2,4,16,32], index: 2, kind: input, shape index: {}]
  %s3 = inlined_call_operand.hbm [shape: bf16[2,1,16,16], index: 3, kind: input, shape index: {}]
  %s4 = inlined_call_operand.hbm [shape: s8[2,1,16,16], index: 4, kind: input, shape index: {}]
  %s5 = inlined_call_operand.hbm [shape: f32[2,4,16,32], index: 5, kind: output, shape index: {}]
  %s6 = sld [smem:[#allocation0]]
  $region73: #{tpu_custom_call.1} parent=0
    _
  %s8 = ssub.s32 1, %s6
  %s9 = scalar_select 0, %s8, %s6
  $region1: #{tpu_custom_call.1} parent=0
    #allocation2 [shape = 'u8[32768]{0}', space=vmem, size = 0x8000, scoped, tag = 'input window, operand 0']
    #allocation3 [shape = 's32[2]{0}', space=sflag, size = 0x8, scoped, tag = 'scoped memory for tpu_custom_call.1']
    #allocation4 [shape = 's32[2]{0}', space=sflag, size = 0x8, scoped, tag = 'scoped memory for tpu_custom_call.1']
    #allocation5 [shape = 'u8[32768]{0}', space=vmem, size = 0x8000, scoped, tag = 'input window, operand 1']
    #allocation6 [shape = 's32[2]{0}', space=sflag, size = 0x8, scoped, tag = 'scoped memory for tpu_custom_call.1']
    #allocation7 [shape = 'u8[32768]{0}', space=vmem, size = 0x8000, scoped, tag = 'input window, operand 2']
    #allocation8 [shape = 'u8[8192]{0}', space=vmem, size = 0x2000, scoped, tag = 'input window, operand 3']
    #allocation9 [shape = 's32[2]{0}', space=sflag, size = 0x8, scoped, tag = 'scoped memory for tpu_custom_call.1']
    #allocation10 [shape = 'u8[4096]{0}', space=vmem, size = 0x1000, scoped, tag = 'input window, operand 4']
    #allocation11 [shape = 'u8[65536]{0}', space=vmem, size = 0x10000, scoped, tag = 'output window, operand 0']
    %10 = vsyncpa [#allocation3], 0
    %s11 = scalar_lea.sflag [#allocation3], 1
    %12 = vsyncpa %s11, 0
    %13 = vsyncpa [#allocation6], 0
    %s14 = scalar_lea.sflag [#allocation6], 1
    %15 = vsyncpa %s14, 0
    %16 = vsyncpa [#allocation9], 0
    %s17 = scalar_lea.sflag [#allocation9], 1
    %18 = vsyncpa %s17, 0
    %19 = vsyncpa [#allocation4], 0
    %s20 = scalar_lea.sflag [#allocation4], 1
    %21 = vsyncpa %s20, 0
    loop: start=0, step=1, limit=4
    $region2: #{tpu_custom_call.1} parent=1 // loop_pre_header
      _
    $region3: #{tpu_custom_call.1} parent=1 // loop_header
      %s23 = sphi 0, %s27
      %p24 = scmp.ge.s32.totalorder %s23, 4
      %s30 = sphi 0, %s42
      %s31 = sphi 0, %s38
      %s32 = sphi 0, %s30
      %s33 = sphi 0, %s31
      %s34 = sphi 0, %s32
      %s35 = sphi 0, %s33
      %s47 = sphi 0, %s49
      %s50 = sphi 0, %s47
      %s51 = sphi 0, %s50
      %s67 = sphi 0, %s51
      %s75 = sphi 0, %s77
      %s78 = sphi 0, %s75
      %s79 = sphi 0, %s78
      %s95 = sphi 0, %s79
      %s103 = sphi 0, %s105
      %s106 = sphi 0, %s103
      %s107 = sphi 0, %s106
      %s123 = sphi 0, %s107
      %s129 = sphi 0, %s131
      %s132 = sphi 0, %s129
      %s133 = sphi 0, %s132
      %s149 = sphi 0, %s133
      %s155 = sphi 0, %s157
      %s158 = sphi 0, %s155
      %s159 = sphi 0, %s158
      %s175 = sphi 0, %s159
      %s183 = sphi 0, %s185
      %s186 = sphi 0, %s183
      %s187 = sphi 0, %s186
      %s203 = sphi 0, %s187
    $region4: #{tpu_custom_call.1} parent=1 // loop_header_branch
      %26 = sbr.rel (%p24) target = $region8
    $region5: #{tpu_custom_call.1} parent=1 // loop_body
      %s28 = ssub.s32 %s23, 1
      %s29 = ssub.s32 %s23, 2
      %s36 = sadd.s32 1, %s31
      %p37 = scmp.ge.s32.totalorder %s36, 1
      %s38 = scalar_select %p37, 0, %s36
      %s39 = sadd.s32 1, %s30
      %s40 = scalar_select %p37, %s39, %s30
      %p41 = scmp.ge.s32.totalorder %s40, 2
      %s42 = scalar_select %p41, 0, %s40
      %s43 = ssub.s32 %s30, %s42
      %s44 = ssub.s32 %s31, %s38
      %s45 = sor.u32 %s43, %s44
      %p46 = scmp.eq.s32.totalorder %s45, 0
      %s48 = sadd.s32 %s47, 1
      %s49 = scalar_select %p46, %s47, %s48
      %p52 = pneg %p46
      %p53 = scmp.eq.s32.totalorder %s23, 1
      %p54 = por %p52, %p53
      %p55 = scmp.ne.s32.totalorder %s47, %s50
      %p56 = scmp.eq.s32.totalorder %s23, 0
      %p57 = por %p55, %p56
      %p58 = scmp.ne.s32.totalorder %s47, %s50
      %p59 = scmp.eq.s32.totalorder %s28, 1
      %p60 = por %p58, %p59
      %p61 = scmp.ne.s32.totalorder %s50, %s51
      %p62 = scmp.eq.s32.totalorder %s28, 0
      %p63 = por %p61, %p62
      %p64 = scmp.ne.s32.totalorder %s50, %s51
      %p65 = scmp.eq.s32.totalorder %s29, 1
      %p66 = por %p64, %p65
      %p68 = scmp.ne.s32.totalorder %s51, %s67
      %p69 = scmp.eq.s32.totalorder %s29, 0
      %p70 = por %p68, %p69
      %s71 = ssub.s32 %s30, %s42
      %s72 = ssub.s32 %s31, %s38
      %s73 = sor.u32 %s71, %s72
      %p74 = scmp.eq.s32.totalorder %s73, 0
      %s76 = sadd.s32 %s75, 1
      %s77 = scalar_select %p74, %s75, %s76
      %p80 = pneg %p74
      %p81 = scmp.eq.s32.totalorder %s23, 1
      %p82 = por %p80, %p81
      %p83 = scmp.ne.s32.totalorder %s75, %s78
      %p84 = scmp.eq.s32.totalorder %s23, 0
      %p85 = por %p83, %p84
      %p86 = scmp.ne.s32.totalorder %s75, %s78
      %p87 = scmp.eq.s32.totalorder %s28, 1
      %p88 = por %p86, %p87
      %p89 = scmp.ne.s32.totalorder %s78, %s79
      %p90 = scmp.eq.s32.totalorder %s28, 0
      %p91 = por %p89, %p90
      %p92 = scmp.ne.s32.totalorder %s78, %s79
      %p93 = scmp.eq.s32.totalorder %s29, 1
      %p94 = por %p92, %p93
      %p96 = scmp.ne.s32.totalorder %s79, %s95
      %p97 = scmp.eq.s32.totalorder %s29, 0
      %p98 = por %p96, %p97
      %s99 = ssub.s32 %s30, %s42
      %s100 = ssub.s32 %s31, %s38
      %s101 = sor.u32 %s99, %s100
      %p102 = scmp.eq.s32.totalorder %s101, 0
      %s104 = sadd.s32 %s103, 1
      %s105 = scalar_select %p102, %s103, %s104
      %p108 = pneg %p102
      %p109 = scmp.eq.s32.totalorder %s23, 1
      %p110 = por %p108, %p109
      %p111 = scmp.ne.s32.totalorder %s103, %s106
      %p112 = scmp.eq.s32.totalorder %s23, 0
      %p113 = por %p111, %p112
      %p114 = scmp.ne.s32.totalorder %s103, %s106
      %p115 = scmp.eq.s32.totalorder %s28, 1
      %p116 = por %p114, %p115
      %p117 = scmp.ne.s32.totalorder %s106, %s107
      %p118 = scmp.eq.s32.totalorder %s28, 0
      %p119 = por %p117, %p118
      %p120 = scmp.ne.s32.totalorder %s106, %s107
      %p121 = scmp.eq.s32.totalorder %s29, 1
      %p122 = por %p120, %p121
      %p124 = scmp.ne.s32.totalorder %s107, %s123
      %p125 = scmp.eq.s32.totalorder %s29, 0
      %p126 = por %p124, %p125
      %s127 = ssub.s32 %s30, %s42
      %p128 = scmp.eq.s32.totalorder %s127, 0
      %s130 = sadd.s32 %s129, 1
      %s131 = scalar_select %p128, %s129, %s130
      %p134 = pneg %p128
      %p135 = scmp.eq.s32.totalorder %s23, 1
      %p136 = por %p134, %p135
      %p137 = scmp.ne.s32.totalorder %s129, %s132
      %p138 = scmp.eq.s32.totalorder %s23, 0
      %p139 = por %p137, %p138
      %p140 = scmp.ne.s32.totalorder %s129, %s132
      %p141 = scmp.eq.s32.totalorder %s28, 1
      %p142 = por %p140, %p141
      %p143 = scmp.ne.s32.totalorder %s132, %s133
      %p144 = scmp.eq.s32.totalorder %s28, 0
      %p145 = por %p143, %p144
      %p146 = scmp.ne.s32.totalorder %s132, %s133
      %p147 = scmp.eq.s32.totalorder %s29, 1
      %p148 = por %p146, %p147
      %p150 = scmp.ne.s32.totalorder %s133, %s149
      %p151 = scmp.eq.s32.totalorder %s29, 0
      %p152 = por %p150, %p151
      %s153 = ssub.s32 %s30, %s42
      %p154 = scmp.eq.s32.totalorder %s153, 0
      %s156 = sadd.s32 %s155, 1
      %s157 = scalar_select %p154, %s155, %s156
      %p160 = pneg %p154
      %p161 = scmp.eq.s32.totalorder %s23, 1
      %p162 = por %p160, %p161
      %p163 = scmp.ne.s32.totalorder %s155, %s158
      %p164 = scmp.eq.s32.totalorder %s23, 0
      %p165 = por %p163, %p164
      %p166 = scmp.ne.s32.totalorder %s155, %s158
      %p167 = scmp.eq.s32.totalorder %s28, 1
      %p168 = por %p166, %p167
      %p169 = scmp.ne.s32.totalorder %s158, %s159
      %p170 = scmp.eq.s32.totalorder %s28, 0
      %p171 = por %p169, %p170
      %p172 = scmp.ne.s32.totalorder %s158, %s159
      %p173 = scmp.eq.s32.totalorder %s29, 1
      %p174 = por %p172, %p173
      %p176 = scmp.ne.s32.totalorder %s159, %s175
      %p177 = scmp.eq.s32.totalorder %s29, 0
      %p178 = por %p176, %p177
      %s179 = ssub.s32 %s30, %s42
      %s180 = ssub.s32 %s31, %s38
      %s181 = sor.u32 %s179, %s180
      %p182 = scmp.eq.s32.totalorder %s181, 0
      %s184 = sadd.s32 %s183, 1
      %s185 = scalar_select %p182, %s183, %s184
      %p188 = pneg %p182
      %p189 = scmp.eq.s32.totalorder %s23, 1
      %p190 = por %p188, %p189
      %p191 = scmp.ne.s32.totalorder %s183, %s186
      %p192 = scmp.eq.s32.totalorder %s23, 0
      %p193 = por %p191, %p192
      %p194 = scmp.ne.s32.totalorder %s183, %s186
      %p195 = scmp.eq.s32.totalorder %s28, 1
      %p196 = por %p194, %p195
      %p197 = scmp.ne.s32.totalorder %s186, %s187
      %p198 = scmp.eq.s32.totalorder %s28, 0
      %p199 = por %p197, %p198
      %p200 = scmp.ne.s32.totalorder %s186, %s187
      %p201 = scmp.eq.s32.totalorder %s29, 1
      %p202 = por %p200, %p201
      %p204 = scmp.ne.s32.totalorder %s187, %s203
      %p205 = scmp.eq.s32.totalorder %s29, 0
      %p206 = por %p204, %p205
      %p207 = scmp.le.s32.totalorder 1, %s23
      %p208 = scmp.lt.s32.totalorder %s23, 3
      %p209 = pnand %p207, %p208
      %p210 = pneg %p209
      // Predicated region
      $region9: #{tpu_custom_call.1} parent=5 // pred_check
        _
      $region10: #{tpu_custom_call.1} parent=5 // pred_check_branch
        %212 = sbr.rel (%p209) target = $region12
      $region11: #{tpu_custom_call.1} parent=5 // pred_region
        %s213 = ssub.s32 %s23, 1
      $region12: #{tpu_custom_call.1} parent=5 // pred_fallthru
        _
      %p214 = scmp.lt.s32.totalorder %s23, 2
      // Predicated region
      $region13: #{tpu_custom_call.1} parent=5 // pred_check
        %p215 = pneg %p214
      $region14: #{tpu_custom_call.1} parent=5 // pred_check_branch
        %217 = sbr.rel (%p215) target = $region16
      $region15: #{tpu_custom_call.1} parent=5 // pred_region
        // Predicated region
        $region17: #{tpu_custom_call.1} parent=15 // pred_check
          %p218 = pneg %p57
        $region18: #{tpu_custom_call.1} parent=15 // pred_check_branch
          %220 = sbr.rel (%p218) target = $region20
        $region19: #{tpu_custom_call.1} parent=15 // pred_region
          %s221 = sand.u32 %s47, 1
          %s222 = scalar_lea.sflag [#allocation3], %s221
          %s223 = sand.u32 %s47, 1
          %s224 = smul.addr %s223, 32
          %s225 = scalar_lea.vmem [#allocation2], %s224
          %s226 = smul.u32 4, %s31
          %s228 = ssub.s32 512, 512
          %229 = vsyncadd %s222, %s228
          %s230 = smul.addr %s226, 2
          %s231 = smul.addr %s30, 8
          %s232 = sadd.s32 %s230, %s231
          %s233 = smul.addr %s232, 64
          %s234 = scalar_lea.hbm %s0, %s233
          %s235 = sshll.u32 %s225, 4
          %s236 = int_to_ptr.vmem [resolvable:$true] %s235
          %241 = dma.hbm_to_vmem [thread:$0]  %s234, 512, %s236, %s222, 64, 64, 4
        $region20: #{tpu_custom_call.1} parent=15 // pred_fallthru
          _
        // Predicated region
        $region21: #{tpu_custom_call.1} parent=15 // pred_check
          %p242 = pneg %p85
        $region22: #{tpu_custom_call.1} parent=15 // pred_check_branch
          %244 = sbr.rel (%p242) target = $region24
        $region23: #{tpu_custom_call.1} parent=15 // pred_region
          %s245 = sand.u32 %s23, 1
          %s246 = scalar_lea.sflag [#allocation6], %s245
          %s247 = sand.u32 %s75, 1
          %s248 = smul.addr %s247, 32
          %s249 = scalar_lea.vmem [#allocation5], %s248
          %s250 = smul.u32 4, %s31
          %s252 = ssub.s32 512, 512
          %253 = vsyncadd %s246, %s252
          %s254 = smul.addr %s250, 2
          %s255 = smul.addr %s30, 8
          %s256 = sadd.s32 %s254, %s255
          %s257 = smul.addr %s256, 64
          %s258 = scalar_lea.hbm %s1, %s257
          %s259 = sshll.u32 %s249, 4
          %s260 = int_to_ptr.vmem [resolvable:$true] %s259
          %265 = dma.hbm_to_vmem [thread:$0]  %s258, 512, %s260, %s246, 64, 64, 4
        $region24: #{tpu_custom_call.1} parent=15 // pred_fallthru
          _
        // Predicated region
        $region25: #{tpu_custom_call.1} parent=15 // pred_check
          %p266 = pneg %p113
        $region26: #{tpu_custom_call.1} parent=15 // pred_check_branch
          %268 = sbr.rel (%p266) target = $region28
        $region27: #{tpu_custom_call.1} parent=15 // pred_region
          %s269 = sand.u32 %s23, 1
          %s270 = scalar_lea.sflag [#allocation6], %s269
          %s271 = sand.u32 %s103, 1
          %s272 = smul.addr %s271, 32
          %s273 = scalar_lea.vmem [#allocation7], %s272
          %s274 = smul.u32 4, %s31
          %s276 = ssub.s32 512, 512
          %277 = vsyncadd %s270, %s276
          %s278 = smul.addr %s274, 2
          %s279 = smul.addr %s30, 8
          %s280 = sadd.s32 %s278, %s279
          %s281 = smul.addr %s280, 64
          %s282 = scalar_lea.hbm %s2, %s281
          %s283 = sshll.u32 %s273, 4
          %s284 = int_to_ptr.vmem [resolvable:$true] %s283
          %289 = dma.hbm_to_vmem [thread:$0]  %s282, 512, %s284, %s270, 64, 64, 4
        $region28: #{tpu_custom_call.1} parent=15 // pred_fallthru
          _
        // Predicated region
        $region29: #{tpu_custom_call.1} parent=15 // pred_check
          %p290 = pneg %p139
        $region30: #{tpu_custom_call.1} parent=15 // pred_check_branch
          %292 = sbr.rel (%p290) target = $region32
        $region31: #{tpu_custom_call.1} parent=15 // pred_region
          %s293 = sand.u32 %s23, 1
          %s294 = scalar_lea.sflag [#allocation9], %s293
          %s295 = sand.u32 %s129, 1
          %s296 = smul.addr %s295, 8
          %s297 = scalar_lea.vmem [#allocation8], %s296
          %s299 = ssub.s32 128, 128
          %300 = vsyncadd %s294, %s299
          %s301 = smul.addr %s30, 2
          %s302 = smul.addr %s301, 64
          %s303 = scalar_lea.hbm %s3, %s302
          %s304 = sshll.u32 %s297, 4
          %s305 = int_to_ptr.vmem [resolvable:$true] %s304
          %310 = dma.hbm_to_vmem [thread:$0]  %s303, 128, %s305, %s294, 64, 64, 4
        $region32: #{tpu_custom_call.1} parent=15 // pred_fallthru
          _
        // Predicated region
        $region33: #{tpu_custom_call.1} parent=15 // pred_check
          %p311 = pneg %p165
        $region34: #{tpu_custom_call.1} parent=15 // pred_check_branch
          %313 = sbr.rel (%p311) target = $region36
        $region35: #{tpu_custom_call.1} parent=15 // pred_region
          %s314 = sand.u32 %s23, 1
          %s315 = scalar_lea.sflag [#allocation9], %s314
          %s316 = sand.u32 %s155, 1
          %s317 = smul.addr %s316, 4
          %s318 = scalar_lea.vmem [#allocation10], %s317
          %s320 = ssub.s32 64, 64
          %321 = vsyncadd %s315, %s320
          %s322 = smul.addr %s30, 2
          %s323 = smul.addr %s322, 32
          %s324 = scalar_lea.hbm %s4, %s323
          %s325 = sshll.u32 %s318, 4
          %s326 = int_to_ptr.vmem [resolvable:$true] %s325
          %331 = dma.hbm_to_vmem [thread:$0]  %s324, 64, %s326, %s315, 32, 32, 2
        $region36: #{tpu_custom_call.1} parent=15 // pred_fallthru
          _
      $region16: #{tpu_custom_call.1} parent=5 // pred_fallthru
        _
      %p332 = scmp.le.s32.totalorder 1, %s23
      %p333 = scmp.lt.s32.totalorder %s23, 3
      %p334 = pnand %p332, %p333
      %p335 = pneg %p334
      // Predicated region
      $region37: #{tpu_custom_call.1} parent=5 // pred_check
        _
      $region38: #{tpu_custom_call.1} parent=5 // pred_check_branch
        %337 = sbr.rel (%p334) target = $region40
      $region39: #{tpu_custom_call.1} parent=5 // pred_region
        %s338 = ssub.s32 %s23, 1
        %s339 = sand.u32 %s50, 1
        %s340 = scalar_lea.sflag [#allocation3], %s339
        %s341 = sand.u32 %s50, 1
        %s342 = smul.addr %s341, 32
        %s343 = scalar_lea.vmem [#allocation2], %s342
        // Predicated region
        $region41: #{tpu_custom_call.1} parent=39 // pred_check
          %p344 = pneg %p63
        $region42: #{tpu_custom_call.1} parent=39 // pred_check_branch
          %346 = sbr.rel (%p344) target = $region44
        $region43: #{tpu_custom_call.1} parent=39 // pred_region
          %347 = dma.done %s340, 512
        $region44: #{tpu_custom_call.1} parent=39 // pred_fallthru
          _
        %s348 = sand.u32 %s28, 1
        %s349 = scalar_lea.sflag [#allocation6], %s348
        %s350 = sand.u32 %s78, 1
        %s351 = smul.addr %s350, 32
        %s352 = scalar_lea.vmem [#allocation5], %s351
        // Predicated region
        $region45: #{tpu_custom_call.1} parent=39 // pred_check
          %p353 = pneg %p91
        $region46: #{tpu_custom_call.1} parent=39 // pred_check_branch
          %355 = sbr.rel (%p353) target = $region48
        $region47: #{tpu_custom_call.1} parent=39 // pred_region
          %356 = dma.done %s349, 512
        $region48: #{tpu_custom_call.1} parent=39 // pred_fallthru
          _
        %s357 = sand.u32 %s28, 1
        %s358 = scalar_lea.sflag [#allocation6], %s357
        %s359 = sand.u32 %s106, 1
        %s360 = smul.addr %s359, 32
        %s361 = scalar_lea.vmem [#allocation7], %s360
        // Predicated region
        $region49: #{tpu_custom_call.1} parent=39 // pred_check
          %p362 = pneg %p119
        $region50: #{tpu_custom_call.1} parent=39 // pred_check_branch
          %364 = sbr.rel (%p362) target = $region52
        $region51: #{tpu_custom_call.1} parent=39 // pred_region
          %365 = dma.done %s358, 512
        $region52: #{tpu_custom_call.1} parent=39 // pred_fallthru
          _
        %s366 = sand.u32 %s28, 1
        %s367 = scalar_lea.sflag [#allocation9], %s366
        %s368 = sand.u32 %s132, 1
        %s369 = smul.addr %s368, 8
        %s370 = scalar_lea.vmem [#allocation8], %s369
        // Predicated region
        $region53: #{tpu_custom_call.1} parent=39 // pred_check
          %p371 = pneg %p145
        $region54: #{tpu_custom_call.1} parent=39 // pred_check_branch
          %373 = sbr.rel (%p371) target = $region56
        $region55: #{tpu_custom_call.1} parent=39 // pred_region
          %374 = dma.done %s367, 128
        $region56: #{tpu_custom_call.1} parent=39 // pred_fallthru
          _
        %s375 = sand.u32 %s28, 1
        %s376 = scalar_lea.sflag [#allocation9], %s375
        %s377 = sand.u32 %s158, 1
        %s378 = smul.addr %s377, 4
        %s379 = scalar_lea.vmem [#allocation10], %s378
        // Predicated region
        $region57: #{tpu_custom_call.1} parent=39 // pred_check
          %p380 = pneg %p171
        $region58: #{tpu_custom_call.1} parent=39 // pred_check_branch
          %382 = sbr.rel (%p380) target = $region60
        $region59: #{tpu_custom_call.1} parent=39 // pred_region
          %383 = dma.done %s376, 64
        $region60: #{tpu_custom_call.1} parent=39 // pred_fallthru
          _
        %s384 = sand.u32 %s50, 1
        %s385 = scalar_lea.sflag [#allocation3], %s384
        %s386 = sand.u32 %s50, 1
        %s387 = smul.addr %s386, 32
        %s388 = scalar_lea.vmem [#allocation2], %s387
        %p389 = pneg %p63
        %p390 = pneg %p60
        %s391 = sand.u32 %s28, 1
        %s392 = scalar_lea.sflag [#allocation6], %s391
        %s393 = sand.u32 %s78, 1
        %s394 = smul.addr %s393, 32
        %s395 = scalar_lea.vmem [#allocation5], %s394
        %p396 = pneg %p91
        %p397 = pneg %p88
        %s398 = sand.u32 %s28, 1
        %s399 = scalar_lea.sflag [#allocation6], %s398
        %s400 = sand.u32 %s106, 1
        %s401 = smul.addr %s400, 32
        %s402 = scalar_lea.vmem [#allocation7], %s401
        %p403 = pneg %p119
        %p404 = pneg %p116
        %s405 = sand.u32 %s28, 1
        %s406 = scalar_lea.sflag [#allocation9], %s405
        %s407 = sand.u32 %s132, 1
        %s408 = smul.addr %s407, 8
        %s409 = scalar_lea.vmem [#allocation8], %s408
        %p410 = pneg %p145
        %p411 = pneg %p142
        %s412 = sand.u32 %s28, 1
        %s413 = scalar_lea.sflag [#allocation9], %s412
        %s414 = sand.u32 %s158, 1
        %s415 = smul.addr %s414, 4
        %s416 = scalar_lea.vmem [#allocation10], %s415
        %p417 = pneg %p171
        %p418 = pneg %p168
        %p419 = pneg %p199
        %p420 = pneg %p196
        %s421 = sand.u32 %s186, 1
        %s422 = scalar_lea.sflag [#allocation4], %s421
        %s423 = sand.u32 %s186, 1
        %s424 = smul.addr %s423, 64
        %s425 = scalar_lea.vmem [#allocation11], %s424
        %s426 = smul.u32 4, %s33
        %s427 = smul.u32 4, %s33
        %s428 = smul.u32 4, %s33
        %s429 = smul.u32 4, %s33
        %v433 = vld [vmem:[%s343] sm:$0xf]
        %v434 = vld [vmem:[%s343 + $0x4] sm:$0xf]
        %v435 = vld [vmem:[%s343 + $0x8] sm:$0xf]
        %v436 = vld [vmem:[%s343 + $0xc] sm:$0xf]
        %v437 = vld [vmem:[%s343 + $0x10] sm:$0xf]
        %v438 = vld [vmem:[%s343 + $0x14] sm:$0xf]
        %v439 = vld [vmem:[%s343 + $0x18] sm:$0xf]
        %v440 = vld [vmem:[%s343 + $0x1c] sm:$0xf]
        %v441 = vld [vmem:[%s352] sm:$0xf]
        %v442 = vld [vmem:[%s352 + $0x4] sm:$0xf]
        %v443 = vld [vmem:[%s352 + $0x8] sm:$0xf]
        %v444 = vld [vmem:[%s352 + $0xc] sm:$0xf]
        %v445 = vld [vmem:[%s352 + $0x10] sm:$0xf]
        %v446 = vld [vmem:[%s352 + $0x14] sm:$0xf]
        %v447 = vld [vmem:[%s352 + $0x18] sm:$0xf]
        %v448 = vld [vmem:[%s352 + $0x1c] sm:$0xf]
        %v449 = vld [vmem:[%s361] sm:$0xf]
        %v450 = vld [vmem:[%s361 + $0x4] sm:$0xf]
        %v451 = vld [vmem:[%s361 + $0x8] sm:$0xf]
        %v452 = vld [vmem:[%s361 + $0xc] sm:$0xf]
        %v453 = vld [vmem:[%s361 + $0x10] sm:$0xf]
        %v454 = vld [vmem:[%s361 + $0x14] sm:$0xf]
        %v455 = vld [vmem:[%s361 + $0x18] sm:$0xf]
        %v456 = vld [vmem:[%s361 + $0x1c] sm:$0xf]
        %v457 = vld [vmem:[%s370] sm:$0xf]
        %v458 = vld [vmem:[%s370 + $0x4] sm:$0xf]
        %v459 = vunpack.c.l.bf16 %v457
        %v460 = vunpack.c.l.bf16 %v458
        %v461 = vld [vmem:[%s379] sm:$0x3]
        %v462 = vld [vmem:[%s379 + $0x2] sm:$0x3]
        %v465 = vunpack.c.l.b16 %v433
        %v466 = vunpack.c.l.b16 %v434
        %v467 = vpack.c.b16 %v466, %v465
        %v470 = vunpack.c.l.b16 %v441
        %v471 = vunpack.c.l.b16 %v442
        %v472 = vpack.c.b16 %v471, %v470
        %vm473 = vcmask 261120
        %v475 = vsel %vm473, %v467, 0
        %v478 = vsel %vm473, %v472, 0
        %480 = vmatprep.subr.bf16.mxu0 0
        %481 = vmatpush1.bf16.xpose.msra.mxu0 0
        %482 = vmatprep.subr.bf16.mxu0 0
        %483 = vmatpush1.bf16.xpose.msra.mxu0 0
        %484 = vmatprep.subr.bf16.mxu0 0
        %485 = vmatpush1.bf16.xpose.msra.mxu0 0
        %486 = vmatprep.subr.bf16.mxu0 0
        %487 = vmatpush1.bf16.xpose.msra.mxu0 0
        %488 = vmatprep.subr.bf16.mxu0 0
        %489 = vmatpush1.bf16.xpose.msra.mxu0 0
        %490 = vmatprep.subr.bf16.mxu0 0
        %491 = vmatpush1.bf16.xpose.msra.mxu0 0
        %492 = vmatprep.subr.bf16.mxu0 0
        %493 = vmatpush1.bf16.xpose.msra.mxu0 0
        %494 = vmatprep.subr.bf16.mxu0 0
        %495 = vmatpush1.bf16.xpose.msra.mxu0 %v478
        %496 = vmatprep.subr.bf16.mxu0 0
        %497 = vmatpush2.bf16.xpose.msra.mxu0 0
        %498 = vmatprep.subr.bf16.mxu0 0
        %499 = vmatpush2.bf16.xpose.msra.mxu0 0
        %500 = vmatprep.subr.bf16.mxu0 0
        %501 = vmatpush2.bf16.xpose.msra.mxu0 0
        %502 = vmatprep.subr.bf16.mxu0 0
        %503 = vmatpush2.bf16.xpose.msra.mxu0 0
        %504 = vmatprep.subr.bf16.mxu0 0
        %505 = vmatpush2.bf16.xpose.msra.mxu0 0
        %506 = vmatprep.subr.bf16.mxu0 0
        %507 = vmatpush2.bf16.xpose.msra.mxu0 0
        %508 = vmatprep.subr.bf16.mxu0 0
        %509 = vmatpush2.bf16.xpose.msra.mxu0 0
        %510 = vmatprep.subr.bf16.mxu0 0
        %511 = vmatpush2.bf16.xpose.msra.mxu0 0
        %512 = vmatprep.mubr.bf16.mxu0 0
        %513 = vmatmul.mubr.bf16.gmra.mxu0 %v475
        %v514 = vpop.f32.mrf.mxu0
        %v515 = vadd.f32 0.0, %v514
        %v516 = vpop.f32.mrf.mxu0
        %v517 = vpop.f32.mrf.mxu0
        %v518 = vadd.f32 0.0, %v517
        %v519 = vpop.f32.mrf.mxu0
        %520 = vdwg.mxu0
        %v523 = vunpack.c.l.b16 %v435
        %v524 = vunpack.c.l.b16 %v436
        %v525 = vpack.c.b16 %v524, %v523
        %v528 = vunpack.c.l.b16 %v443
        %v529 = vunpack.c.l.b16 %v444
        %v530 = vpack.c.b16 %v529, %v528
        %v532 = vsel %vm473, %v525, 0
        %v535 = vsel %vm473, %v530, 0
        %537 = vmatprep.subr.bf16.mxu0 0
        %538 = vmatpush1.bf16.xpose.msra.mxu0 0
        %539 = vmatprep.subr.bf16.mxu0 0
        %540 = vmatpush1.bf16.xpose.msra.mxu0 0
        %541 = vmatprep.subr.bf16.mxu0 0
        %542 = vmatpush1.bf16.xpose.msra.mxu0 0
        %543 = vmatprep.subr.bf16.mxu0 0
        %544 = vmatpush1.bf16.xpose.msra.mxu0 0
        %545 = vmatprep.subr.bf16.mxu0 0
        %546 = vmatpush1.bf16.xpose.msra.mxu0 0
        %547 = vmatprep.subr.bf16.mxu0 0
        %548 = vmatpush1.bf16.xpose.msra.mxu0 0
        %549 = vmatprep.subr.bf16.mxu0 0
        %550 = vmatpush1.bf16.xpose.msra.mxu0 0
        %551 = vmatprep.subr.bf16.mxu0 0
        %552 = vmatpush1.bf16.xpose.msra.mxu0 %v535
        %553 = vmatprep.subr.bf16.mxu0 0
        %554 = vmatpush2.bf16.xpose.msra.mxu0 0
        %555 = vmatprep.subr.bf16.mxu0 0
        %556 = vmatpush2.bf16.xpose.msra.mxu0 0
        %557 = vmatprep.subr.bf16.mxu0 0
        %558 = vmatpush2.bf16.xpose.msra.mxu0 0
        %559 = vmatprep.subr.bf16.mxu0 0
        %560 = vmatpush2.bf16.xpose.msra.mxu0 0
        %561 = vmatprep.subr.bf16.mxu0 0
        %562 = vmatpush2.bf16.xpose.msra.mxu0 0
        %563 = vmatprep.subr.bf16.mxu0 0
        %564 = vmatpush2.bf16.xpose.msra.mxu0 0
        %565 = vmatprep.subr.bf16.mxu0 0
        %566 = vmatpush2.bf16.xpose.msra.mxu0 0
        %567 = vmatprep.subr.bf16.mxu0 0
        %568 = vmatpush2.bf16.xpose.msra.mxu0 0
        %569 = vmatprep.mubr.bf16.mxu0 0
        %570 = vmatmul.mubr.bf16.gmra.mxu0 %v532
        %v571 = vpop.f32.mrf.mxu0
        %v572 = vadd.f32 0.0, %v571
        %v573 = vpop.f32.mrf.mxu0
        %v574 = vpop.f32.mrf.mxu0
        %v575 = vadd.f32 0.0, %v574
        %v576 = vpop.f32.mrf.mxu0
        %577 = vdwg.mxu0
        %v580 = vunpack.c.l.b16 %v437
        %v581 = vunpack.c.l.b16 %v438
        %v582 = vpack.c.b16 %v581, %v580
        %v585 = vunpack.c.l.b16 %v445
        %v586 = vunpack.c.l.b16 %v446
        %v587 = vpack.c.b16 %v586, %v585
        %v589 = vsel %vm473, %v582, 0
        %v592 = vsel %vm473, %v587, 0
        %594 = vmatprep.subr.bf16.mxu0 0
        %595 = vmatpush1.bf16.xpose.msra.mxu0 0
        %596 = vmatprep.subr.bf16.mxu0 0
        %597 = vmatpush1.bf16.xpose.msra.mxu0 0
        %598 = vmatprep.subr.bf16.mxu0 0
        %599 = vmatpush1.bf16.xpose.msra.mxu0 0
        %600 = vmatprep.subr.bf16.mxu0 0
        %601 = vmatpush1.bf16.xpose.msra.mxu0 0
        %602 = vmatprep.subr.bf16.mxu0 0
        %603 = vmatpush1.bf16.xpose.msra.mxu0 0
        %604 = vmatprep.subr.bf16.mxu0 0
        %605 = vmatpush1.bf16.xpose.msra.mxu0 0
        %606 = vmatprep.subr.bf16.mxu0 0
        %607 = vmatpush1.bf16.xpose.msra.mxu0 0
        %608 = vmatprep.subr.bf16.mxu0 0
        %609 = vmatpush1.bf16.xpose.msra.mxu0 %v592
        %610 = vmatprep.subr.bf16.mxu0 0
        %611 = vmatpush2.bf16.xpose.msra.mxu0 0
        %612 = vmatprep.subr.bf16.mxu0 0
        %613 = vmatpush2.bf16.xpose.msra.mxu0 0
        %614 = vmatprep.subr.bf16.mxu0 0
        %615 = vmatpush2.bf16.xpose.msra.mxu0 0
        %616 = vmatprep.subr.bf16.mxu0 0
        %617 = vmatpush2.bf16.xpose.msra.mxu0 0
        %618 = vmatprep.subr.bf16.mxu0 0
        %619 = vmatpush2.bf16.xpose.msra.mxu0 0
        %620 = vmatprep.subr.bf16.mxu0 0
        %621 = vmatpush2.bf16.xpose.msra.mxu0 0
        %622 = vmatprep.subr.bf16.mxu0 0
        %623 = vmatpush2.bf16.xpose.msra.mxu0 0
        %624 = vmatprep.subr.bf16.mxu0 0
        %625 = vmatpush2.bf16.xpose.msra.mxu0 0
        %626 = vmatprep.mubr.bf16.mxu0 0
        %627 = vmatmul.mubr.bf16.gmra.mxu0 %v589
        %v628 = vpop.f32.mrf.mxu0
        %v629 = vadd.f32 0.0, %v628
        %v630 = vpop.f32.mrf.mxu0
        %v631 = vpop.f32.mrf.mxu0
        %v632 = vadd.f32 0.0, %v631
        %v633 = vpop.f32.mrf.mxu0
        %634 = vdwg.mxu0
        %v637 = vunpack.c.l.b16 %v439
        %v638 = vunpack.c.l.b16 %v440
        %v639 = vpack.c.b16 %v638, %v637
        %v642 = vunpack.c.l.b16 %v447
        %v643 = vunpack.c.l.b16 %v448
        %v644 = vpack.c.b16 %v643, %v642
        %v646 = vsel %vm473, %v639, 0
        %v649 = vsel %vm473, %v644, 0
        %651 = vmatprep.subr.bf16.mxu0 0
        %652 = vmatpush1.bf16.xpose.msra.mxu0 0
        %653 = vmatprep.subr.bf16.mxu0 0
        %654 = vmatpush1.bf16.xpose.msra.mxu0 0
        %655 = vmatprep.subr.bf16.mxu0 0
        %656 = vmatpush1.bf16.xpose.msra.mxu0 0
        %657 = vmatprep.subr.bf16.mxu0 0
        %658 = vmatpush1.bf16.xpose.msra.mxu0 0
        %659 = vmatprep.subr.bf16.mxu0 0
        %660 = vmatpush1.bf16.xpose.msra.mxu0 0
        %661 = vmatprep.subr.bf16.mxu0 0
        %662 = vmatpush1.bf16.xpose.msra.mxu0 0
        %663 = vmatprep.subr.bf16.mxu0 0
        %664 = vmatpush1.bf16.xpose.msra.mxu0 0
        %665 = vmatprep.subr.bf16.mxu0 0
        %666 = vmatpush1.bf16.xpose.msra.mxu0 %v649
        %667 = vmatprep.subr.bf16.mxu0 0
        %668 = vmatpush2.bf16.xpose.msra.mxu0 0
        %669 = vmatprep.subr.bf16.mxu0 0
        %670 = vmatpush2.bf16.xpose.msra.mxu0 0
        %671 = vmatprep.subr.bf16.mxu0 0
        %672 = vmatpush2.bf16.xpose.msra.mxu0 0
        %673 = vmatprep.subr.bf16.mxu0 0
        %674 = vmatpush2.bf16.xpose.msra.mxu0 0
        %675 = vmatprep.subr.bf16.mxu0 0
        %676 = vmatpush2.bf16.xpose.msra.mxu0 0
        %677 = vmatprep.subr.bf16.mxu0 0
        %678 = vmatpush2.bf16.xpose.msra.mxu0 0
        %679 = vmatprep.subr.bf16.mxu0 0
        %680 = vmatpush2.bf16.xpose.msra.mxu0 0
        %681 = vmatprep.subr.bf16.mxu0 0
        %682 = vmatpush2.bf16.xpose.msra.mxu0 0
        %683 = vmatprep.mubr.bf16.mxu0 0
        %684 = vmatmul.mubr.bf16.gmra.mxu0 %v646
        %v685 = vpop.f32.mrf.mxu0
        %v686 = vadd.f32 0.0, %v685
        %v687 = vpop.f32.mrf.mxu0
        %v688 = vpop.f32.mrf.mxu0
        %v689 = vadd.f32 0.0, %v688
        %v690 = vpop.f32.mrf.mxu0
        %691 = vdwg.mxu0
        %v692 = vmul.f32 %v515, %v459
        %v693 = vmul.f32 %v518, %v460
        %v694 = vmul.f32 %v572, %v459
        %v695 = vmul.f32 %v575, %v460
        %v696 = vmul.f32 %v629, %v459
        %v697 = vmul.f32 %v632, %v460
        %v698 = vmul.f32 %v686, %v459
        %v699 = vmul.f32 %v689, %v460
        %vm700 = vnez %v461
        %vm701 = vnez %v462
        %v702 = vsel %vm700, 16843009, 0
        %v703 = vsel %vm701, 16843009, 0
        %v704 = vunpack.c.0.s8 %v702
        %v705 = vunpack.c.0.s8 %v703
        %vm706 = vcmp.ne.s32.totalorder %v704, 0
        %vm707 = vcmp.ne.s32.totalorder %v705, 0
        %v708 = vsel %vm706, 1, 0
        %v709 = vsel %vm707, 1, 0
        %vm710 = vcmp.eq.s32.totalorder %v708, 1
        %vm711 = vcmp.eq.s32.totalorder %v709, 1
        %v712 = vsel %vm710, -1e+09, %v692
        %v713 = vsel %vm711, -1e+09, %v693
        %v714 = vsel %vm710, -1e+09, %v694
        %v715 = vsel %vm711, -1e+09, %v695
        %v716 = vsel %vm710, -1e+09, %v696
        %v717 = vsel %vm711, -1e+09, %v697
        %v718 = vsel %vm710, -1e+09, %v698
        %v719 = vsel %vm711, -1e+09, %v699
        %vm720 = vcmask 130048
        %v721 = vsel %vm720, %v712, -inf
        %722 = vmax.xlane.f32.xlu0 %v721
        %v723 = vpop.xlane.xlu0 %722
        %v724 = vsel %vm720, %v713, -inf
        %725 = vmax.xlane.f32.xlu0 %v724
        %v726 = vpop.xlane.xlu0 %725
        %v727 = vsel %vm720, %v714, -inf
        %728 = vmax.xlane.f32.xlu0 %v727
        %v729 = vpop.xlane.xlu0 %728
        %v730 = vsel %vm720, %v715, -inf
        %731 = vmax.xlane.f32.xlu0 %v730
        %v732 = vpop.xlane.xlu0 %731
        %v733 = vsel %vm720, %v716, -inf
        %734 = vmax.xlane.f32.xlu0 %v733
        %v735 = vpop.xlane.xlu0 %734
        %v736 = vsel %vm720, %v717, -inf
        %737 = vmax.xlane.f32.xlu0 %v736
        %v738 = vpop.xlane.xlu0 %737
        %v739 = vsel %vm720, %v718, -inf
        %740 = vmax.xlane.f32.xlu0 %v739
        %v741 = vpop.xlane.xlu0 %740
        %v742 = vsel %vm720, %v719, -inf
        %743 = vmax.xlane.f32.xlu0 %v742
        %v744 = vpop.xlane.xlu0 %743
        %v745 = vsub.f32 %v712, %v723
        %v746 = vsub.f32 %v713, %v726
        %v747 = vsub.f32 %v714, %v729
        %v748 = vsub.f32 %v715, %v732
        %v749 = vsub.f32 %v716, %v735
        %v750 = vsub.f32 %v717, %v738
        %v751 = vsub.f32 %v718, %v741
        %v752 = vsub.f32 %v719, %v744
        %v753 = vmul.f32 %v745, 1.442695
        %v754 = vpow.pop %v753
        %v755 = vmul.f32 %v746, 1.442695
        %v756 = vpow.pop %v755
        %v757 = vmul.f32 %v747, 1.442695
        %v758 = vpow.pop %v757
        %v759 = vmul.f32 %v748, 1.442695
        %v760 = vpow.pop %v759
        %v761 = vmul.f32 %v749, 1.442695
        %v762 = vpow.pop %v761
        %v763 = vmul.f32 %v750, 1.442695
        %v764 = vpow.pop %v763
        %v765 = vmul.f32 %v751, 1.442695
        %v766 = vpow.pop %v765
        %v767 = vmul.f32 %v752, 1.442695
        %v768 = vpow.pop %v767
        %v769 = vsel %vm720, %v754, 0.0
        %770 = vadd.xlane.f32.xlu0 %v769
        %v771 = vpop.xlane.xlu0 %770
        %v772 = vsel %vm720, %v756, 0.0
        %773 = vadd.xlane.f32.xlu0 %v772
        %v774 = vpop.xlane.xlu0 %773
        %v775 = vsel %vm720, %v758, 0.0
        %776 = vadd.xlane.f32.xlu0 %v775
        %v777 = vpop.xlane.xlu0 %776
        %v778 = vsel %vm720, %v760, 0.0
        %779 = vadd.xlane.f32.xlu0 %v778
        %v780 = vpop.xlane.xlu0 %779
        %v781 = vsel %vm720, %v762, 0.0
        %782 = vadd.xlane.f32.xlu0 %v781
        %v783 = vpop.xlane.xlu0 %782
        %v784 = vsel %vm720, %v764, 0.0
        %785 = vadd.xlane.f32.xlu0 %v784
        %v786 = vpop.xlane.xlu0 %785
        %v787 = vsel %vm720, %v766, 0.0
        %788 = vadd.xlane.f32.xlu0 %v787
        %v789 = vpop.xlane.xlu0 %788
        %v790 = vsel %vm720, %v768, 0.0
        %791 = vadd.xlane.f32.xlu0 %v790
        %v792 = vpop.xlane.xlu0 %791
        %v793 = vpack.c.bf16 %v756, %v754
        %v794 = vpack.c.bf16 %v760, %v758
        %v795 = vpack.c.bf16 %v764, %v762
        %v796 = vpack.c.bf16 %v768, %v766
        %v799 = vunpack.c.l.b16 %v449
        %v800 = vunpack.c.l.b16 %v450
        %v801 = vpack.c.b16 %v800, %v799
        %v804 = vsel %vm720, %v793, 0
        %806 = vmatprep.subr.bf16.mxu0 0
        %807 = vmatpush1.bf16.msra.mxu0 0
        %808 = vmatprep.subr.bf16.mxu0 0
        %809 = vmatpush1.bf16.msra.mxu0 0
        %810 = vmatprep.subr.bf16.mxu0 0
        %811 = vmatpush1.bf16.msra.mxu0 0
        %812 = vmatprep.subr.bf16.mxu0 0
        %813 = vmatpush1.bf16.msra.mxu0 0
        %814 = vmatprep.subr.bf16.mxu0 0
        %815 = vmatpush1.bf16.msra.mxu0 0
        %816 = vmatprep.subr.bf16.mxu0 0
        %817 = vmatpush1.bf16.msra.mxu0 0
        %818 = vmatprep.subr.bf16.mxu0 0
        %819 = vmatpush1.bf16.msra.mxu0 0
        %820 = vmatprep.subr.bf16.mxu0 0
        %821 = vmatpush1.bf16.msra.mxu0 %v801
        %822 = vmatprep.subr.bf16.mxu0 0
        %823 = vmatpush2.bf16.msra.mxu0 0
        %824 = vmatprep.subr.bf16.mxu0 0
        %825 = vmatpush2.bf16.msra.mxu0 0
        %826 = vmatprep.subr.bf16.mxu0 0
        %827 = vmatpush2.bf16.msra.mxu0 0
        %828 = vmatprep.subr.bf16.mxu0 0
        %829 = vmatpush2.bf16.msra.mxu0 0
        %830 = vmatprep.subr.bf16.mxu0 0
        %831 = vmatpush2.bf16.msra.mxu0 0
        %832 = vmatprep.subr.bf16.mxu0 0
        %833 = vmatpush2.bf16.msra.mxu0 0
        %834 = vmatprep.subr.bf16.mxu0 0
        %835 = vmatpush2.bf16.msra.mxu0 0
        %836 = vmatprep.subr.bf16.mxu0 0
        %837 = vmatpush2.bf16.msra.mxu0 0
        %838 = vmatprep.mubr.bf16.mxu0 0
        %839 = vmatmul.mubr.bf16.gmra.mxu0 %v804
        %v840 = vpop.f32.mrf.mxu0
        %v841 = vadd.f32 0.0, %v840
        %v842 = vpop.f32.mrf.mxu0
        %v843 = vpop.f32.mrf.mxu0
        %v844 = vadd.f32 0.0, %v843
        %v845 = vpop.f32.mrf.mxu0
        %846 = vdwg.mxu0
        %v849 = vunpack.c.l.b16 %v451
        %v850 = vunpack.c.l.b16 %v452
        %v851 = vpack.c.b16 %v850, %v849
        %v854 = vsel %vm720, %v794, 0
        %856 = vmatprep.subr.bf16.mxu0 0
        %857 = vmatpush1.bf16.msra.mxu0 0
        %858 = vmatprep.subr.bf16.mxu0 0
        %859 = vmatpush1.bf16.msra.mxu0 0
        %860 = vmatprep.subr.bf16.mxu0 0
        %861 = vmatpush1.bf16.msra.mxu0 0
        %862 = vmatprep.subr.bf16.mxu0 0
        %863 = vmatpush1.bf16.msra.mxu0 0
        %864 = vmatprep.subr.bf16.mxu0 0
        %865 = vmatpush1.bf16.msra.mxu0 0
        %866 = vmatprep.subr.bf16.mxu0 0
        %867 = vmatpush1.bf16.msra.mxu0 0
        %868 = vmatprep.subr.bf16.mxu0 0
        %869 = vmatpush1.bf16.msra.mxu0 0
        %870 = vmatprep.subr.bf16.mxu0 0
        %871 = vmatpush1.bf16.msra.mxu0 %v851
        %872 = vmatprep.subr.bf16.mxu0 0
        %873 = vmatpush2.bf16.msra.mxu0 0
        %874 = vmatprep.subr.bf16.mxu0 0
        %875 = vmatpush2.bf16.msra.mxu0 0
        %876 = vmatprep.subr.bf16.mxu0 0
        %877 = vmatpush2.bf16.msra.mxu0 0
        %878 = vmatprep.subr.bf16.mxu0 0
        %879 = vmatpush2.bf16.msra.mxu0 0
        %880 = vmatprep.subr.bf16.mxu0 0
        %881 = vmatpush2.bf16.msra.mxu0 0
        %882 = vmatprep.subr.bf16.mxu0 0
        %883 = vmatpush2.bf16.msra.mxu0 0
        %884 = vmatprep.subr.bf16.mxu0 0
        %885 = vmatpush2.bf16.msra.mxu0 0
        %886 = vmatprep.subr.bf16.mxu0 0
        %887 = vmatpush2.bf16.msra.mxu0 0
        %888 = vmatprep.mubr.bf16.mxu0 0
        %889 = vmatmul.mubr.bf16.gmra.mxu0 %v854
        %v890 = vpop.f32.mrf.mxu0
        %v891 = vadd.f32 0.0, %v890
        %v892 = vpop.f32.mrf.mxu0
        %v893 = vpop.f32.mrf.mxu0
        %v894 = vadd.f32 0.0, %v893
        %v895 = vpop.f32.mrf.mxu0
        %896 = vdwg.mxu0
        %v899 = vunpack.c.l.b16 %v453
        %v900 = vunpack.c.l.b16 %v454
        %v901 = vpack.c.b16 %v900, %v899
        %v904 = vsel %vm720, %v795, 0
        %906 = vmatprep.subr.bf16.mxu0 0
        %907 = vmatpush1.bf16.msra.mxu0 0
        %908 = vmatprep.subr.bf16.mxu0 0
        %909 = vmatpush1.bf16.msra.mxu0 0
        %910 = vmatprep.subr.bf16.mxu0 0
        %911 = vmatpush1.bf16.msra.mxu0 0
        %912 = vmatprep.subr.bf16.mxu0 0
        %913 = vmatpush1.bf16.msra.mxu0 0
        %914 = vmatprep.subr.bf16.mxu0 0
        %915 = vmatpush1.bf16.msra.mxu0 0
        %916 = vmatprep.subr.bf16.mxu0 0
        %917 = vmatpush1.bf16.msra.mxu0 0
        %918 = vmatprep.subr.bf16.mxu0 0
        %919 = vmatpush1.bf16.msra.mxu0 0
        %920 = vmatprep.subr.bf16.mxu0 0
        %921 = vmatpush1.bf16.msra.mxu0 %v901
        %922 = vmatprep.subr.bf16.mxu0 0
        %923 = vmatpush2.bf16.msra.mxu0 0
        %924 = vmatprep.subr.bf16.mxu0 0
        %925 = vmatpush2.bf16.msra.mxu0 0
        %926 = vmatprep.subr.bf16.mxu0 0
        %927 = vmatpush2.bf16.msra.mxu0 0
        %928 = vmatprep.subr.bf16.mxu0 0
        %929 = vmatpush2.bf16.msra.mxu0 0
        %930 = vmatprep.subr.bf16.mxu0 0
        %931 = vmatpush2.bf16.msra.mxu0 0
        %932 = vmatprep.subr.bf16.mxu0 0
        %933 = vmatpush2.bf16.msra.mxu0 0
        %934 = vmatprep.subr.bf16.mxu0 0
        %935 = vmatpush2.bf16.msra.mxu0 0
        %936 = vmatprep.subr.bf16.mxu0 0
        %937 = vmatpush2.bf16.msra.mxu0 0
        %938 = vmatprep.mubr.bf16.mxu0 0
        %939 = vmatmul.mubr.bf16.gmra.mxu0 %v904
        %v940 = vpop.f32.mrf.mxu0
        %v941 = vadd.f32 0.0, %v940
        %v942 = vpop.f32.mrf.mxu0
        %v943 = vpop.f32.mrf.mxu0
        %v944 = vadd.f32 0.0, %v943
        %v945 = vpop.f32.mrf.mxu0
        %946 = vdwg.mxu0
        %v949 = vunpack.c.l.b16 %v455
        %v950 = vunpack.c.l.b16 %v456
        %v951 = vpack.c.b16 %v950, %v949
        %v954 = vsel %vm720, %v796, 0
        %956 = vmatprep.subr.bf16.mxu0 0
        %957 = vmatpush1.bf16.msra.mxu0 0
        %958 = vmatprep.subr.bf16.mxu0 0
        %959 = vmatpush1.bf16.msra.mxu0 0
        %960 = vmatprep.subr.bf16.mxu0 0
        %961 = vmatpush1.bf16.msra.mxu0 0
        %962 = vmatprep.subr.bf16.mxu0 0
        %963 = vmatpush1.bf16.msra.mxu0 0
        %964 = vmatprep.subr.bf16.mxu0 0
        %965 = vmatpush1.bf16.msra.mxu0 0
        %966 = vmatprep.subr.bf16.mxu0 0
        %967 = vmatpush1.bf16.msra.mxu0 0
        %968 = vmatprep.subr.bf16.mxu0 0
        %969 = vmatpush1.bf16.msra.mxu0 0
        %970 = vmatprep.subr.bf16.mxu0 0
        %971 = vmatpush1.bf16.msra.mxu0 %v951
        %972 = vmatprep.subr.bf16.mxu0 0
        %973 = vmatpush2.bf16.msra.mxu0 0
        %974 = vmatprep.subr.bf16.mxu0 0
        %975 = vmatpush2.bf16.msra.mxu0 0
        %976 = vmatprep.subr.bf16.mxu0 0
        %977 = vmatpush2.bf16.msra.mxu0 0
        %978 = vmatprep.subr.bf16.mxu0 0
        %979 = vmatpush2.bf16.msra.mxu0 0
        %980 = vmatprep.subr.bf16.mxu0 0
        %981 = vmatpush2.bf16.msra.mxu0 0
        %982 = vmatprep.subr.bf16.mxu0 0
        %983 = vmatpush2.bf16.msra.mxu0 0
        %984 = vmatprep.subr.bf16.mxu0 0
        %985 = vmatpush2.bf16.msra.mxu0 0
        %986 = vmatprep.subr.bf16.mxu0 0
        %987 = vmatpush2.bf16.msra.mxu0 0
        %988 = vmatprep.mubr.bf16.mxu0 0
        %989 = vmatmul.mubr.bf16.gmra.mxu0 %v954
        %v990 = vpop.f32.mrf.mxu0
        %v991 = vadd.f32 0.0, %v990
        %v992 = vpop.f32.mrf.mxu0
        %v993 = vpop.f32.mrf.mxu0
        %v994 = vadd.f32 0.0, %v993
        %v995 = vpop.f32.mrf.mxu0
        %996 = vdwg.mxu0
        %v997 = vrcp.pop %v771
        %v998 = vrcp.pop %v774
        %v999 = vrcp.pop %v777
        %v1000 = vrcp.pop %v780
        %v1001 = vrcp.pop %v783
        %v1002 = vrcp.pop %v786
        %v1003 = vrcp.pop %v789
        %v1004 = vrcp.pop %v792
        %v1005 = vmul.f32 %v841, %v997
        %v1006 = vmul.f32 %v844, %v998
        %v1007 = vmul.f32 %v891, %v999
        %v1008 = vmul.f32 %v894, %v1000
        %v1009 = vmul.f32 %v941, %v1001
        %v1010 = vmul.f32 %v944, %v1002
        %v1011 = vmul.f32 %v991, %v1003
        %v1012 = vmul.f32 %v994, %v1004
        %1013 = vst.msk [vmem:[%s425] sm:$0xff] %vm473, %v1005
        %1014 = vst.msk [vmem:[%s425 + $0x8] sm:$0xff] %vm473, %v1006
        %1015 = vst.msk [vmem:[%s425 + $0x10] sm:$0xff] %vm473, %v1007
        %1016 = vst.msk [vmem:[%s425 + $0x18] sm:$0xff] %vm473, %v1008
        %1017 = vst.msk [vmem:[%s425 + $0x20] sm:$0xff] %vm473, %v1009
        %1018 = vst.msk [vmem:[%s425 + $0x28] sm:$0xff] %vm473, %v1010
        %1019 = vst.msk [vmem:[%s425 + $0x30] sm:$0xff] %vm473, %v1011
        %1020 = vst.msk [vmem:[%s425 + $0x38] sm:$0xff] %vm473, %v1012
        %s1021 = sand.u32 %s186, 1
        %s1022 = scalar_lea.sflag [#allocation4], %s1021
        %s1023 = sand.u32 %s186, 1
        %s1024 = smul.addr %s1023, 64
        %s1025 = scalar_lea.vmem [#allocation11], %s1024
        // Predicated region
        $region61: #{tpu_custom_call.1} parent=39 // pred_check
          %p1026 = pneg %p196
        $region62: #{tpu_custom_call.1} parent=39 // pred_check_branch
          %1028 = sbr.rel (%p1026) target = $region64
        $region63: #{tpu_custom_call.1} parent=39 // pred_region
          %s1029 = smul.u32 4, %s33
          %s1031 = ssub.s32 1024, 1024
          %1032 = vsyncadd %s1022, %s1031
          %s1033 = smul.addr %s1029, 2
          %s1034 = smul.addr %s32, 8
          %s1035 = sadd.s32 %s1033, %s1034
          %s1036 = smul.addr %s1035, 128
          %s1037 = scalar_lea.hbm %s5, %s1036
          %s1038 = sshll.u32 %s1025, 4
          %s1039 = int_to_ptr.vmem [resolvable:$true] %s1038
          %1044 = dma.vmem_to_hbm [thread:$0]  %s1039, 1024, %s1037, %s1022, 128, 128, 8
        $region64: #{tpu_custom_call.1} parent=39 // pred_fallthru
          _
      $region40: #{tpu_custom_call.1} parent=5 // pred_fallthru
        _
      %p1045 = scmp.le.s32.totalorder 2, %s23
      // Predicated region
      $region65: #{tpu_custom_call.1} parent=5 // pred_check
        %p1046 = pneg %p1045
      $region66: #{tpu_custom_call.1} parent=5 // pred_check_branch
        %1048 = sbr.rel (%p1046) target = $region68
      $region67: #{tpu_custom_call.1} parent=5 // pred_region
        %s1049 = ssub.s32 %s23, 2
        // Predicated region
        $region69: #{tpu_custom_call.1} parent=67 // pred_check
          %p1050 = pneg %p202
        $region70: #{tpu_custom_call.1} parent=67 // pred_check_branch
          %1052 = sbr.rel (%p1050) target = $region72
        $region71: #{tpu_custom_call.1} parent=67 // pred_region
          %s1053 = sand.u32 %s187, 1
          %s1054 = scalar_lea.sflag [#allocation4], %s1053
          %s1055 = sand.u32 %s187, 1
          %s1056 = smul.addr %s1055, 64
          %s1057 = scalar_lea.vmem [#allocation11], %s1056
          %1058 = dma.done %s1054, 1024
        $region72: #{tpu_custom_call.1} parent=67 // pred_fallthru
          _
      $region68: #{tpu_custom_call.1} parent=5 // pred_fallthru
        _
    $region6: #{tpu_custom_call.1} parent=1 // loop_footer
      %s27 = sadd.s32 1, %s23
    $region7: #{tpu_custom_call.1} parent=1 // loop_footer_branch
      %22 = sbr.rel target = $region3
    $region8: #{tpu_custom_call.1} parent=1 // loop_exit
      _
    %1059 = vsyncpa [#allocation3], 1
    %s1060 = scalar_lea.sflag [#allocation3], 1
    %1061 = vsyncpa %s1060, 1
    %1062 = vsyncpa [#allocation6], 1
    %s1063 = scalar_lea.sflag [#allocation6], 1
    %1064 = vsyncpa %s1063, 1
    %1065 = vsyncpa [#allocation9], 1
    %s1066 = scalar_lea.sflag [#allocation9], 1
    %1067 = vsyncpa %s1066, 1
    %1068 = vsyncpa [#allocation4], 1
    %s1069 = scalar_lea.sflag [#allocation4], 1
    %1070 = vsyncpa %s1069, 1

</llo_original>
